<compile_context>
chip_gen: v6e
topology: v6e:2x2x1
jax: 0.10.0
libtpu: 0.0.40
codegen_flags: <defaults>
</compile_context>

<pallas_src>
import jax
import jax.numpy as jnp
from jax.experimental import pallas as pl
from jax.experimental.pallas import tpu as pltpu


# ----------------------------------------------------------------------------
# Pallas kernel: fused 3-layer MLP ensemble forward (block-diagonal weights)
# ----------------------------------------------------------------------------
def _ensemble_mlp_kernel(x_ref, w1_ref, b1_ref, w2_ref, b2_ref, w3_ref, b3_ref,
                         o_ref):
    mm_dtype = w1_ref.dtype                      # matmul input dtype (f32/bf16)
    x = x_ref[...]                               # [tb, F], already mm_dtype

    # Layer 1: x @ W1 + b1, ReLU   (f32 accumulation, f32 epilogue)
    h1 = jnp.dot(x, w1_ref[...], preferred_element_type=jnp.float32)
    h1 = jnp.maximum(h1 + b1_ref[...], 0.0)

    # Layer 2: h1 @ W2 + b2, ReLU
    h2 = jnp.dot(h1.astype(mm_dtype), w2_ref[...],
                 preferred_element_type=jnp.float32)
    h2 = jnp.maximum(h2 + b2_ref[...], 0.0)

    # Layer 3: h2 @ W3 + b3, sigmoid  (lane-dense padded output slab)
    logits = jnp.dot(h2.astype(mm_dtype), w3_ref[...],
                     preferred_element_type=jnp.float32) + b3_ref[...]
    o_ref[...] = jax.nn.sigmoid(logits).astype(o_ref.dtype)


# ----------------------------------------------------------------------------
# Parameter packing helpers
# ----------------------------------------------------------------------------
def _round_up(x, m):
    return ((x + m - 1) // m) * m


def _block_diag(mats):
    rows = sum(m.shape[0] for m in mats)
    cols = sum(m.shape[1] for m in mats)
    out = jnp.zeros((rows, cols), mats[0].dtype)
    r = c = 0
    for m in mats:
        out = out.at[r:r + m.shape[0], c:c + m.shape[1]].set(m)
        r += m.shape[0]
        c += m.shape[1]
    return out


def pack_ensemble_params(networks, matmul_dtype=jnp.bfloat16, lane_pad=128):
    """Pack N identical-architecture member MLPs into 3 fused weight matrices."""
    n = len(networks)
    w1_0, _, w2_0, _, w3_0, _ = networks[0]
    f, h1 = w1_0.shape
    h2 = w2_0.shape[1]
    o = w3_0.shape[1]
    for p in networks:
        assert p[0].shape == (f, h1) and p[2].shape == (h1, h2) \
            and p[4].shape == (h2, o), "all member networks must share shapes"

    w1 = jnp.concatenate([p[0] for p in networks], axis=1)     # [F, N*H1]
    b1 = jnp.concatenate([p[1] for p in networks], axis=1)     # [1, N*H1]
    w2 = _block_diag([p[2] for p in networks])                 # [N*H1, N*H2]
    b2 = jnp.concatenate([p[3] for p in networks], axis=1)     # [1, N*H2]
    w3 = _block_diag([p[4] for p in networks])                 # [N*H2, N*O]
    b3 = jnp.concatenate([p[5] for p in networks], axis=1)     # [1, N*O]

    # Lane-dense output: pad last dim to a multiple of 128 so stores are
    # unmasked full-width vst (padding columns are zero weight / zero bias).
    out_pad = _round_up(n * o, lane_pad)
    w3 = jnp.pad(w3, ((0, 0), (0, out_pad - n * o)))
    b3 = jnp.pad(b3, ((0, 0), (0, out_pad - n * o)))

    packed = (w1.astype(matmul_dtype), b1.astype(jnp.float32),
              w2.astype(matmul_dtype), b2.astype(jnp.float32),
              w3.astype(matmul_dtype), b3.astype(jnp.float32))
    return packed, (n, o, out_pad)


def _default_batch_tile(batch, max_tile=1024):
    """Biggest tile <= max_tile that divides B and is a multiple of 8."""
    if batch <= max_tile:
        return batch
    for tb in range(max_tile - (max_tile % 8), 7, -8):
        if batch % tb == 0:
            return tb
    return batch  # fallback: single (possibly large) tile


# ----------------------------------------------------------------------------
# pallas_call wrapper
# ----------------------------------------------------------------------------
def ensemble_mlp_forward(x, packed, *, batch_tile=None):
    """x: [B, F] -> [B, OUT_PAD] fused ensemble output (lane-dense slab)."""
    w1, b1, w2, b2, w3, b3 = packed
    B, F = x.shape
    H1 = w1.shape[1]
    H2 = w2.shape[1]
    OP = w3.shape[1]

    tb = _default_batch_tile(B) if batch_tile is None else batch_tile
    assert B % tb == 0, "batch must be divisible by the batch tile"
    assert tb == B or tb % 8 == 0, "batch tile must be a multiple of 8"

    grid = (B // tb,)

    # x is cast to the matmul dtype outside the kernel (halves x HBM/DMA
    # traffic on the bf16 path); weights & biases are grid-resident.
    x_in = x.astype(w1.dtype)

    in_specs = [
        pl.BlockSpec((tb, F), lambda i: (i, 0)),     # x tile (batch-pipelined)
        pl.BlockSpec((F, H1), lambda i: (0, 0)),     # W1  (concat)
        pl.BlockSpec((1, H1), lambda i: (0, 0)),     # b1
        pl.BlockSpec((H1, H2), lambda i: (0, 0)),    # W2  (block-diag)
        pl.BlockSpec((1, H2), lambda i: (0, 0)),     # b2
        pl.BlockSpec((H2, OP), lambda i: (0, 0)),    # W3  (block-diag, padded)
        pl.BlockSpec((1, OP), lambda i: (0, 0)),     # b3
    ]
    out_spec = pl.BlockSpec((tb, OP), lambda i: (i, 0))

    return pl.pallas_call(
        _ensemble_mlp_kernel,
        out_shape=jax.ShapeDtypeStruct((B, OP), jnp.float32),
        grid=grid,
        in_specs=in_specs,
        out_specs=out_spec,
        compiler_params=pltpu.CompilerParams(
            dimension_semantics=("parallel",)),
    )(x_in, w1, b1, w2, b2, w3, b3)


# ----------------------------------------------------------------------------
# ABCDiscoNet container
# ----------------------------------------------------------------------------
class ABCDiscoNet:
    """JAX/Pallas equivalent of the PyTorch ABCDiscoNet container.

    `networks` is a list of parameter tuples (w1, b1, w2, b2, w3, b3); each
    defines one member MLP.  forward(x) returns a list of outputs, one per
    member network — matching `[dnn(x) for dnn in self.dnn]` — but the whole
    ensemble runs as ONE fused, jitted pallas_call.
    """

    def __init__(self, networks, matmul_dtype=jnp.bfloat16, batch_tile=None):
        self.dnn = list(networks)
        self._packed, (self._n, self._o, self._op) = pack_ensemble_params(
            self.dnn, matmul_dtype=matmul_dtype)
        self._batch_tile = batch_tile

        def _fused(x):
            y = ensemble_mlp_forward(x, self._packed,
                                     batch_tile=self._batch_tile)
            o = self._o
            return tuple(y[:, n * o:(n + 1) * o] for n in range(self._n))

        self._jit_forward = jax.jit(_fused)

    def __len__(self):
        return len(self.dnn)

    def forward(self, x):
        return list(self._jit_forward(x))

    __call__ = forward


def init_mlp_params(key, in_features, hidden, out_features):
    """Deterministic synthetic init (PyTorch-Linear-style uniform fan-in)."""
    k1, k2, k3 = jax.random.split(key, 3)

    def _linear(k, fin, fout):
        bound = 1.0 / jnp.sqrt(fin)
        kw, kb = jax.random.split(k)
        w = jax.random.uniform(kw, (fin, fout), jnp.float32, -bound, bound)
        b = jax.random.uniform(kb, (1, fout), jnp.float32, -bound, bound)
        return w, b

    w1, b1 = _linear(k1, in_features, hidden)
    w2, b2 = _linear(k2, hidden, hidden)
    w3, b3 = _linear(k3, hidden, out_features)
    return (w1, b1, w2, b2, w3, b3)


if __name__ == "__main__":
    # Small shapes: batch=8, in_features=16, hidden=32, 1 sigmoid output,
    # 2 member networks (the typical ABCDisCo two-classifier setup).
    B, F, H, O = 8, 16, 32, 1
    N_NETS = 2

    root = jax.random.PRNGKey(0)
    kx, *knets = jax.random.split(root, 1 + N_NETS)

    x = jax.random.normal(kx, (B, F), dtype=jnp.float32)
    networks = [init_mlp_params(k, F, H, O) for k in knets]

    # Reference: plain-JAX per-network MLP forward.
    def ref_mlp(x, p):
        w1, b1, w2, b2, w3, b3 = p
        h1 = jnp.maximum(x @ w1 + b1, 0.0)
        h2 = jnp.maximum(h1 @ w2 + b2, 0.0)
        return jax.nn.sigmoid(h2 @ w3 + b3)

    # 1) f32-matmul path: exact match to the reference.
    model_f32 = ABCDiscoNet(networks, matmul_dtype=jnp.float32)
    outs = model_f32(x)
    assert len(model_f32) == N_NETS and len(outs) == N_NETS
    for out, params in zip(outs, networks):
        out = jax.block_until_ready(out)
        ref = ref_mlp(x, params)
        assert out.shape == (B, O)
        assert jnp.allclose(out, ref, atol=1e-5, rtol=1e-5)

    # 2) bf16-matmul path (native MXU dtype on v6e/v7x): looser tolerance.
    model_bf16 = ABCDiscoNet(networks, matmul_dtype=jnp.bfloat16)
    outs_bf = model_bf16(x)
    for out, params in zip(outs_bf, networks):
        out = jax.block_until_ready(out)
        ref = ref_mlp(x, params)
        assert out.shape == (B, O)
        assert jnp.allclose(out, ref, atol=2e-2, rtol=2e-2)

    print("KERNEL_OK")
</pallas_src>

<mosaic_0001>
module attributes {stable_mosaic.version = 11 : i64} {
  func.func @_ensemble_mlp_kernel(%arg0: i32, %arg1: memref<8x16xf32, #tpu.memory_space<vmem>>, %arg2: memref<16x64xf32, #tpu.memory_space<vmem>>, %arg3: memref<1x64xf32, #tpu.memory_space<vmem>>, %arg4: memref<64x64xf32, #tpu.memory_space<vmem>>, %arg5: memref<1x64xf32, #tpu.memory_space<vmem>>, %arg6: memref<64x128xf32, #tpu.memory_space<vmem>>, %arg7: memref<1x128xf32, #tpu.memory_space<vmem>>, %arg8: memref<8x128xf32, #tpu.memory_space<vmem>>) attributes {dimension_semantics = [#tpu.dimension_semantics<parallel>], iteration_bounds = array<i64: 1>, scalar_prefetch = 0 : i64, scratch_operands = 0 : i64, tpu.core_type = #tpu.core_type<tc>, window_params = [{transform_indices = @transform_0, window_bounds = array<i64: 8, 16>}, {pipeline_mode = #tpu.pipeline_mode<synchronous>, transform_indices = @transform_1, window_bounds = array<i64: 16, 64>}, {pipeline_mode = #tpu.pipeline_mode<synchronous>, transform_indices = @transform_2, window_bounds = array<i64: 1, 64>}, {pipeline_mode = #tpu.pipeline_mode<synchronous>, transform_indices = @transform_3, window_bounds = array<i64: 64, 64>}, {pipeline_mode = #tpu.pipeline_mode<synchronous>, transform_indices = @transform_4, window_bounds = array<i64: 1, 64>}, {pipeline_mode = #tpu.pipeline_mode<synchronous>, transform_indices = @transform_5, window_bounds = array<i64: 64, 128>}, {pipeline_mode = #tpu.pipeline_mode<synchronous>, transform_indices = @transform_6, window_bounds = array<i64: 1, 128>}, {transform_indices = @transform_7, window_bounds = array<i64: 8, 128>}]} {
    %c0 = arith.constant 0 : index
    %c0_0 = arith.constant 0 : index
    %0 = vector.load %arg1[%c0, %c0_0] : memref<8x16xf32, #tpu.memory_space<vmem>>, vector<8x16xf32>
    %c0_1 = arith.constant 0 : index
    %c0_2 = arith.constant 0 : index
    %1 = vector.load %arg2[%c0_1, %c0_2] : memref<16x64xf32, #tpu.memory_space<vmem>>, vector<16x64xf32>
    %cst = arith.constant dense<0.000000e+00> : vector<8x64xf32>
    %2 = tpu.matmul %0, %1, %cst {dimension_numbers = #tpu.dot_dimension_numbers<[1], [0], [0], [1], [0, 0, 1, 1], [], []>} : vector<8x16xf32>, vector<16x64xf32>, vector<8x64xf32> -> vector<8x64xf32>
    %c0_3 = arith.constant 0 : index
    %c0_4 = arith.constant 0 : index
    %3 = vector.load %arg3[%c0_3, %c0_4] : memref<1x64xf32, #tpu.memory_space<vmem>>, vector<1x64xf32>
    %4 = vector.broadcast %3 : vector<1x64xf32> to vector<8x64xf32>
    %5 = arith.addf %2, %4 : vector<8x64xf32>
    %cst_5 = arith.constant 0.000000e+00 : f32
    %6 = vector.broadcast %cst_5 : f32 to vector<8x64xf32>
    %7 = arith.maximumf %5, %6 : vector<8x64xf32>
    %c0_6 = arith.constant 0 : index
    %c0_7 = arith.constant 0 : index
    %8 = vector.load %arg4[%c0_6, %c0_7] : memref<64x64xf32, #tpu.memory_space<vmem>>, vector<64x64xf32>
    %cst_8 = arith.constant dense<0.000000e+00> : vector<8x64xf32>
    %9 = tpu.matmul %7, %8, %cst_8 {dimension_numbers = #tpu.dot_dimension_numbers<[1], [0], [0], [1], [0, 0, 1, 1], [], []>} : vector<8x64xf32>, vector<64x64xf32>, vector<8x64xf32> -> vector<8x64xf32>
    %c0_9 = arith.constant 0 : index
    %c0_10 = arith.constant 0 : index
    %10 = vector.load %arg5[%c0_9, %c0_10] : memref<1x64xf32, #tpu.memory_space<vmem>>, vector<1x64xf32>
    %11 = vector.broadcast %10 : vector<1x64xf32> to vector<8x64xf32>
    %12 = arith.addf %9, %11 : vector<8x64xf32>
    %cst_11 = arith.constant 0.000000e+00 : f32
    %13 = vector.broadcast %cst_11 : f32 to vector<8x64xf32>
    %14 = arith.maximumf %12, %13 : vector<8x64xf32>
    %c0_12 = arith.constant 0 : index
    %c0_13 = arith.constant 0 : index
    %15 = vector.load %arg6[%c0_12, %c0_13] : memref<64x128xf32, #tpu.memory_space<vmem>>, vector<64x128xf32>
    %cst_14 = arith.constant dense<0.000000e+00> : vector<8x128xf32>
    %16 = tpu.matmul %14, %15, %cst_14 {dimension_numbers = #tpu.dot_dimension_numbers<[1], [0], [0], [1], [0, 0, 1, 1], [], []>} : vector<8x64xf32>, vector<64x128xf32>, vector<8x128xf32> -> vector<8x128xf32>
    %c0_15 = arith.constant 0 : index
    %c0_16 = arith.constant 0 : index
    %17 = vector.load %arg7[%c0_15, %c0_16] : memref<1x128xf32, #tpu.memory_space<vmem>>, vector<1x128xf32>
    %18 = vector.broadcast %17 : vector<1x128xf32> to vector<8x128xf32>
    %19 = arith.addf %16, %18 : vector<8x128xf32>
    %20 = arith.negf %19 : vector<8x128xf32>
    %21 = math.exp %20 : vector<8x128xf32>
    %cst_17 = arith.constant 1.000000e+00 : f32
    %22 = vector.broadcast %cst_17 : f32 to vector<8x128xf32>
    %23 = arith.addf %22, %21 : vector<8x128xf32>
    %24 = arith.divf %22, %23 : vector<8x128xf32>
    %c0_18 = arith.constant 0 : index
    %c0_19 = arith.constant 0 : index
    %25 = vector.load %arg8[%c0_18, %c0_19] : memref<8x128xf32, #tpu.memory_space<vmem>>, vector<8x128xf32>
    tpu.vector_store %arg8[%c0_18, %c0_19], %24 {strides = array<i32>} : memref<8x128xf32, #tpu.memory_space<vmem>>, vector<8x128xf32>,
    return
  }
  func.func @transform_0(%arg0: i32) -> (i32, i32) {
    %c0_i32 = arith.constant 0 : i32
    %c0_i32_0 = arith.constant 0 : i32
    return %arg0, %c0_i32 : i32, i32
  }
  func.func @transform_1(%arg0: i32) -> (i32, i32) {
    %c0_i32 = arith.constant 0 : i32
    %c0_i32_0 = arith.constant 0 : i32
    %c0_i32_1 = arith.constant 0 : i32
    return %c0_i32, %c0_i32_0 : i32, i32
  }
  func.func @transform_2(%arg0: i32) -> (i32, i32) {
    %c0_i32 = arith.constant 0 : i32
    %c0_i32_0 = arith.constant 0 : i32
    %c0_i32_1 = arith.constant 0 : i32
    return %c0_i32, %c0_i32_0 : i32, i32
  }
  func.func @transform_3(%arg0: i32) -> (i32, i32) {
    %c0_i32 = arith.constant 0 : i32
    %c0_i32_0 = arith.constant 0 : i32
    %c0_i32_1 = arith.constant 0 : i32
    return %c0_i32, %c0_i32_0 : i32, i32
  }
  func.func @transform_4(%arg0: i32) -> (i32, i32) {
    %c0_i32 = arith.constant 0 : i32
    %c0_i32_0 = arith.constant 0 : i32
    %c0_i32_1 = arith.constant 0 : i32
    return %c0_i32, %c0_i32_0 : i32, i32
  }
  func.func @transform_5(%arg0: i32) -> (i32, i32) {
    %c0_i32 = arith.constant 0 : i32
    %c0_i32_0 = arith.constant 0 : i32
    %c0_i32_1 = arith.constant 0 : i32
    return %c0_i32, %c0_i32_0 : i32, i32
  }
  func.func @transform_6(%arg0: i32) -> (i32, i32) {
    %c0_i32 = arith.constant 0 : i32
    %c0_i32_0 = arith.constant 0 : i32
    %c0_i32_1 = arith.constant 0 : i32
    return %c0_i32, %c0_i32_0 : i32, i32
  }
  func.func @transform_7(%arg0: i32) -> (i32, i32) {
    %c0_i32 = arith.constant 0 : i32
    %c0_i32_0 = arith.constant 0 : i32
    return %arg0, %c0_i32 : i32, i32
  }
}

</mosaic_0001>

<llo_original>
// kernel: _fused.1
$region0: #{_fused.1}
  #allocation0 [shape = 'u32[]', space=smem, size = 0x4, offset = 0x4, fixed_abs, tag = 'smem constant byte address 0x4 - core index']
  #allocation1 [shape = 'u32[144,128]{1,0:T(1,128)}', space=vmem, size = 0x12000, scoped, tag = 'internal scratch']
  %s0 = inlined_call_operand.hbm [shape: f32[8,16], index: 0, kind: input, shape index: {}]
  %s1 = inlined_call_operand.hbm [shape: f32[16,64], index: 1, kind: input, shape index: {}]
  %s2 = inlined_call_operand.vmem [shape: f32[1,64], index: 2, kind: input, shape index: {}]
  %s3 = inlined_call_operand.hbm [shape: f32[64,64], index: 3, kind: input, shape index: {}]
  %s4 = inlined_call_operand.vmem [shape: f32[1,64], index: 4, kind: input, shape index: {}]
  %s5 = inlined_call_operand.hbm [shape: f32[64,128], index: 5, kind: input, shape index: {}]
  %s6 = inlined_call_operand.vmem [shape: f32[1,128], index: 6, kind: input, shape index: {}]
  %s7 = inlined_call_operand.vmem [shape: f32[8,128], index: 7, kind: output, shape index: {}]
  %s8 = sld [smem:[#allocation0]]
  $region54: #{_fused.1} parent=0
    _
  %s10 = ssub.s32 1, %s8
  %s11 = scalar_select 0, %s10, %s8
  $region1: #{_fused.1} parent=0
    #allocation2 [shape = 'u8[4096]{0}', space=vmem, size = 0x1000, scoped, tag = 'input window, operand 0, single buffered']
    #allocation3 [shape = 's32[1]{0}', space=sflag, size = 0x4, scoped, tag = 'scoped memory for _fused.1']
    #allocation4 [shape = 'u8[8192]{0}', space=vmem, size = 0x2000, scoped, tag = 'input window, operand 1, single buffered']
    #allocation5 [shape = 's32[1]{0}', space=sflag, size = 0x4, scoped, tag = 'scoped memory for _fused.1']
    #allocation6 [shape = 'u8[32768]{0}', space=vmem, size = 0x8000, scoped, tag = 'input window, operand 3, single buffered']
    #allocation7 [shape = 'u8[32768]{0}', space=vmem, size = 0x8000, scoped, tag = 'input window, operand 5, single buffered']
    #allocation8 [shape = 's32[1]{0}', space=sflag, size = 0x4, scoped, tag = 'scoped memory for _fused.1']
    %12 = vsyncpa [#allocation3], 0
    %13 = vsyncpa [#allocation5], 0
    %14 = vsyncpa [#allocation8], 0
    // Predicated region
    $region2: #{_fused.1} parent=1 // pred_check
      _
    $region3: #{_fused.1} parent=1 // pred_check_branch
      %16 = sbr.rel (0) target = $region5
    $region4: #{_fused.1} parent=1 // pred_region
      %s18 = ssub.s32 128, 128
      %19 = vsyncadd [#allocation3], %s18
      %s21 = sshll.u32 [#allocation2], 4
      %s22 = int_to_ptr.vmem [resolvable:$true] %s21
      %24 = dma.hbm_to_vmem [thread:$0]  %s0, 128, %s22, [#allocation3]
    $region5: #{_fused.1} parent=1 // pred_fallthru
      _
    // Predicated region
    $region6: #{_fused.1} parent=1 // pred_check
      _
    $region7: #{_fused.1} parent=1 // pred_check_branch
      %26 = sbr.rel (0) target = $region9
    $region8: #{_fused.1} parent=1 // pred_region
      %s28 = ssub.s32 256, 256
      %29 = vsyncadd [#allocation5], %s28
      %s30 = sshll.u32 [#allocation4], 4
      %s31 = int_to_ptr.vmem [resolvable:$true] %s30
      %36 = dma.hbm_to_vmem [thread:$0]  %s1, 256, %s31, [#allocation5], 128, 128, 8
    $region9: #{_fused.1} parent=1 // pred_fallthru
      _
    // Predicated region
    $region10: #{_fused.1} parent=1 // pred_check
      _
    $region11: #{_fused.1} parent=1 // pred_check_branch
      %38 = sbr.rel (0) target = $region13
    $region12: #{_fused.1} parent=1 // pred_region
      _
    $region13: #{_fused.1} parent=1 // pred_fallthru
      _
    // Predicated region
    $region14: #{_fused.1} parent=1 // pred_check
      _
    $region15: #{_fused.1} parent=1 // pred_check_branch
      %40 = sbr.rel (0) target = $region17
    $region16: #{_fused.1} parent=1 // pred_region
      %s42 = ssub.s32 1024, 1024
      %43 = vsyncadd [#allocation5], %s42
      %s44 = sshll.u32 [#allocation6], 4
      %s45 = int_to_ptr.vmem [resolvable:$true] %s44
      %50 = dma.hbm_to_vmem [thread:$0]  %s3, 1024, %s45, [#allocation5], 128, 128, 8
    $region17: #{_fused.1} parent=1 // pred_fallthru
      _
    // Predicated region
    $region18: #{_fused.1} parent=1 // pred_check
      _
    $region19: #{_fused.1} parent=1 // pred_check_branch
      %52 = sbr.rel (0) target = $region21
    $region20: #{_fused.1} parent=1 // pred_region
      _
    $region21: #{_fused.1} parent=1 // pred_fallthru
      _
    // Predicated region
    $region22: #{_fused.1} parent=1 // pred_check
      _
    $region23: #{_fused.1} parent=1 // pred_check_branch
      %54 = sbr.rel (0) target = $region25
    $region24: #{_fused.1} parent=1 // pred_region
      %s56 = ssub.s32 1024, 1024
      %57 = vsyncadd [#allocation8], %s56
      %s58 = sshll.u32 [#allocation7], 4
      %s59 = int_to_ptr.vmem [resolvable:$true] %s58
      %64 = dma.hbm_to_vmem [thread:$0]  %s5, 1024, %s59, [#allocation8], 128, 128, 8
    $region25: #{_fused.1} parent=1 // pred_fallthru
      _
    // Predicated region
    $region26: #{_fused.1} parent=1 // pred_check
      _
    $region27: #{_fused.1} parent=1 // pred_check_branch
      %66 = sbr.rel (0) target = $region29
    $region28: #{_fused.1} parent=1 // pred_region
      _
    $region29: #{_fused.1} parent=1 // pred_fallthru
      _
    // Predicated region
    $region30: #{_fused.1} parent=1 // pred_check
      _
    $region31: #{_fused.1} parent=1 // pred_check_branch
      %68 = sbr.rel (0) target = $region33
    $region32: #{_fused.1} parent=1 // pred_region
      %69 = dma.done [#allocation3], 128
    $region33: #{_fused.1} parent=1 // pred_fallthru
      _
    // Predicated region
    $region34: #{_fused.1} parent=1 // pred_check
      _
    $region35: #{_fused.1} parent=1 // pred_check_branch
      %71 = sbr.rel (0) target = $region37
    $region36: #{_fused.1} parent=1 // pred_region
      %72 = dma.done [#allocation5], 256
    $region37: #{_fused.1} parent=1 // pred_fallthru
      _
    // Predicated region
    $region38: #{_fused.1} parent=1 // pred_check
      _
    $region39: #{_fused.1} parent=1 // pred_check_branch
      %74 = sbr.rel (0) target = $region41
    $region40: #{_fused.1} parent=1 // pred_region
      %75 = dma.done [#allocation5], 1024
    $region41: #{_fused.1} parent=1 // pred_fallthru
      _
    // Predicated region
    $region42: #{_fused.1} parent=1 // pred_check
      _
    $region43: #{_fused.1} parent=1 // pred_check_branch
      %77 = sbr.rel (0) target = $region45
    $region44: #{_fused.1} parent=1 // pred_region
      %78 = dma.done [#allocation8], 1024
    $region45: #{_fused.1} parent=1 // pred_fallthru
      _
    %v79 = vld [vmem:[#allocation2] sm:$0xff]
    %v80 = vld [vmem:[#allocation4] sm:$0xff]
    %v81 = vld [vmem:[#allocation4 + $0x8] sm:$0xff]
    %v82 = vld [vmem:[%s2] sm:$0x1]
    %v84 = vlaneseq
    %v85 = vshrl.u32 %v84, 7
    %v86 = vsub.s32 0, %v85
    %v87 = vrot.slane %v82, %v86
    %vm89 = vcmask 130048
    %v91 = vsel %vm89, %v79, 0
    %93 = vmatprep.subr.mxu0 0.0
    %94 = vmatpush1.msra.mxu0 0.0
    %95 = vmatprep.subr.mxu0 0.0
    %96 = vmatpush1.msra.mxu0 0.0
    %97 = vmatprep.subr.mxu0 0.0
    %98 = vmatpush1.msra.mxu0 0.0
    %99 = vmatprep.subr.mxu0 0.0
    %100 = vmatpush1.msra.mxu0 0.0
    %101 = vmatprep.subr.mxu0 0.0
    %102 = vmatpush1.msra.mxu0 0.0
    %103 = vmatprep.subr.mxu0 0.0
    %104 = vmatpush1.msra.mxu0 0.0
    %105 = vmatprep.subr.mxu0 0.0
    %106 = vmatpush1.msra.mxu0 0.0
    %107 = vmatprep.subr.mxu0 0.0
    %108 = vmatpush1.msra.mxu0 0.0
    %109 = vmatprep.subr.mxu0 0.0
    %110 = vmatpush1.msra.mxu0 0.0
    %111 = vmatprep.subr.mxu0 0.0
    %112 = vmatpush1.msra.mxu0 0.0
    %113 = vmatprep.subr.mxu0 0.0
    %114 = vmatpush1.msra.mxu0 0.0
    %115 = vmatprep.subr.mxu0 0.0
    %116 = vmatpush1.msra.mxu0 0.0
    %117 = vmatprep.subr.mxu0 0.0
    %118 = vmatpush1.msra.mxu0 0.0
    %119 = vmatprep.subr.mxu0 0.0
    %120 = vmatpush1.msra.mxu0 0.0
    %121 = vmatprep.subr.mxu0 0.0
    %122 = vmatpush1.msra.mxu0 %v81
    %123 = vmatprep.subr.mxu0 0.0
    %124 = vmatpush1.msra.mxu0 %v80
    %125 = vmatprep.subr.mxu0 0.0
    %126 = vmatpush2.msra.mxu0 0.0
    %127 = vmatprep.subr.mxu0 0.0
    %128 = vmatpush2.msra.mxu0 0.0
    %129 = vmatprep.subr.mxu0 0.0
    %130 = vmatpush2.msra.mxu0 0.0
    %131 = vmatprep.subr.mxu0 0.0
    %132 = vmatpush2.msra.mxu0 0.0
    %133 = vmatprep.subr.mxu0 0.0
    %134 = vmatpush2.msra.mxu0 0.0
    %135 = vmatprep.subr.mxu0 0.0
    %136 = vmatpush2.msra.mxu0 0.0
    %137 = vmatprep.subr.mxu0 0.0
    %138 = vmatpush2.msra.mxu0 0.0
    %139 = vmatprep.subr.mxu0 0.0
    %140 = vmatpush2.msra.mxu0 0.0
    %141 = vmatprep.subr.mxu0 0.0
    %142 = vmatpush2.msra.mxu0 0.0
    %143 = vmatprep.subr.mxu0 0.0
    %144 = vmatpush2.msra.mxu0 0.0
    %145 = vmatprep.subr.mxu0 0.0
    %146 = vmatpush2.msra.mxu0 0.0
    %147 = vmatprep.subr.mxu0 0.0
    %148 = vmatpush2.msra.mxu0 0.0
    %149 = vmatprep.subr.mxu0 0.0
    %150 = vmatpush2.msra.mxu0 0.0
    %151 = vmatprep.subr.mxu0 0.0
    %152 = vmatpush2.msra.mxu0 0.0
    %153 = vmatprep.subr.mxu0 0.0
    %154 = vmatpush2.msra.mxu0 0.0
    %155 = vmatprep.subr.mxu0 0.0
    %156 = vmatpush2.msra.mxu0 0.0
    %157 = vmatprep.mubr.f32.mxu0 0.0
    %158 = vmatmul.mubr.f32.gmra.mxu0 %v91
    %v159 = vpop.f32.mrf.mxu0
    %v160 = vadd.f32 %v87, %v159
    %v161 = vpop.f32.mrf.mxu0
    %162 = vdwg.mxu0
    %v163 = vmax.f32 %v160, 0.0
    %v164 = vld [vmem:[#allocation6] sm:$0xff]
    %v165 = vld [vmem:[#allocation6 + $0x8] sm:$0xff]
    %v166 = vld [vmem:[#allocation6 + $0x10] sm:$0xff]
    %v167 = vld [vmem:[#allocation6 + $0x18] sm:$0xff]
    %v168 = vld [vmem:[#allocation6 + $0x20] sm:$0xff]
    %v169 = vld [vmem:[#allocation6 + $0x28] sm:$0xff]
    %v170 = vld [vmem:[#allocation6 + $0x30] sm:$0xff]
    %v171 = vld [vmem:[#allocation6 + $0x38] sm:$0xff]
    %v172 = vld [vmem:[%s4] sm:$0x1]
    %v174 = vlaneseq
    %v175 = vshrl.u32 %v174, 7
    %v176 = vsub.s32 0, %v175
    %v177 = vrot.slane %v172, %v176
    %vm179 = vcmask 523264
    %v181 = vsel %vm179, %v163, 0
    %183 = vmatprep.subr.mxu0 0.0
    %184 = vmatpush1.msra.mxu0 0.0
    %185 = vmatprep.subr.mxu0 0.0
    %186 = vmatpush1.msra.mxu0 0.0
    %187 = vmatprep.subr.mxu0 0.0
    %188 = vmatpush1.msra.mxu0 0.0
    %189 = vmatprep.subr.mxu0 0.0
    %190 = vmatpush1.msra.mxu0 0.0
    %191 = vmatprep.subr.mxu0 0.0
    %192 = vmatpush1.msra.mxu0 0.0
    %193 = vmatprep.subr.mxu0 0.0
    %194 = vmatpush1.msra.mxu0 0.0
    %195 = vmatprep.subr.mxu0 0.0
    %196 = vmatpush1.msra.mxu0 0.0
    %197 = vmatprep.subr.mxu0 0.0
    %198 = vmatpush1.msra.mxu0 0.0
    %199 = vmatprep.subr.mxu0 0.0
    %200 = vmatpush1.msra.mxu0 %v171
    %201 = vmatprep.subr.mxu0 0.0
    %202 = vmatpush1.msra.mxu0 %v170
    %203 = vmatprep.subr.mxu0 0.0
    %204 = vmatpush1.msra.mxu0 %v169
    %205 = vmatprep.subr.mxu0 0.0
    %206 = vmatpush1.msra.mxu0 %v168
    %207 = vmatprep.subr.mxu0 0.0
    %208 = vmatpush1.msra.mxu0 %v167
    %209 = vmatprep.subr.mxu0 0.0
    %210 = vmatpush1.msra.mxu0 %v166
    %211 = vmatprep.subr.mxu0 0.0
    %212 = vmatpush1.msra.mxu0 %v165
    %213 = vmatprep.subr.mxu0 0.0
    %214 = vmatpush1.msra.mxu0 %v164
    %215 = vmatprep.subr.mxu0 0.0
    %216 = vmatpush2.msra.mxu0 0.0
    %217 = vmatprep.subr.mxu0 0.0
    %218 = vmatpush2.msra.mxu0 0.0
    %219 = vmatprep.subr.mxu0 0.0
    %220 = vmatpush2.msra.mxu0 0.0
    %221 = vmatprep.subr.mxu0 0.0
    %222 = vmatpush2.msra.mxu0 0.0
    %223 = vmatprep.subr.mxu0 0.0
    %224 = vmatpush2.msra.mxu0 0.0
    %225 = vmatprep.subr.mxu0 0.0
    %226 = vmatpush2.msra.mxu0 0.0
    %227 = vmatprep.subr.mxu0 0.0
    %228 = vmatpush2.msra.mxu0 0.0
    %229 = vmatprep.subr.mxu0 0.0
    %230 = vmatpush2.msra.mxu0 0.0
    %231 = vmatprep.subr.mxu0 0.0
    %232 = vmatpush2.msra.mxu0 0.0
    %233 = vmatprep.subr.mxu0 0.0
    %234 = vmatpush2.msra.mxu0 0.0
    %235 = vmatprep.subr.mxu0 0.0
    %236 = vmatpush2.msra.mxu0 0.0
    %237 = vmatprep.subr.mxu0 0.0
    %238 = vmatpush2.msra.mxu0 0.0
    %239 = vmatprep.subr.mxu0 0.0
    %240 = vmatpush2.msra.mxu0 0.0
    %241 = vmatprep.subr.mxu0 0.0
    %242 = vmatpush2.msra.mxu0 0.0
    %243 = vmatprep.subr.mxu0 0.0
    %244 = vmatpush2.msra.mxu0 0.0
    %245 = vmatprep.subr.mxu0 0.0
    %246 = vmatpush2.msra.mxu0 0.0
    %247 = vmatprep.mubr.f32.mxu0 0.0
    %248 = vmatmul.mubr.f32.gmra.mxu0 %v181
    %v249 = vpop.f32.mrf.mxu0
    %v250 = vadd.f32 %v177, %v249
    %v251 = vpop.f32.mrf.mxu0
    %252 = vdwg.mxu0
    %v253 = vmax.f32 %v250, 0.0
    %v254 = vld [vmem:[#allocation7] sm:$0xff]
    %v255 = vld [vmem:[#allocation7 + $0x8] sm:$0xff]
    %v256 = vld [vmem:[#allocation7 + $0x10] sm:$0xff]
    %v257 = vld [vmem:[#allocation7 + $0x18] sm:$0xff]
    %v258 = vld [vmem:[#allocation7 + $0x20] sm:$0xff]
    %v259 = vld [vmem:[#allocation7 + $0x28] sm:$0xff]
    %v260 = vld [vmem:[#allocation7 + $0x30] sm:$0xff]
    %v261 = vld [vmem:[#allocation7 + $0x38] sm:$0xff]
    %v262 = vld [vmem:[%s6] sm:$0x1]
    %v264 = vlaneseq
    %v265 = vshrl.u32 %v264, 7
    %v266 = vsub.s32 0, %v265
    %v267 = vrot.slane %v262, %v266
    %v270 = vsel %vm179, %v253, 0
    %272 = vmatprep.subr.mxu0 0.0
    %273 = vmatpush1.msra.mxu0 0.0
    %274 = vmatprep.subr.mxu0 0.0
    %275 = vmatpush1.msra.mxu0 0.0
    %276 = vmatprep.subr.mxu0 0.0
    %277 = vmatpush1.msra.mxu0 0.0
    %278 = vmatprep.subr.mxu0 0.0
    %279 = vmatpush1.msra.mxu0 0.0
    %280 = vmatprep.subr.mxu0 0.0
    %281 = vmatpush1.msra.mxu0 0.0
    %282 = vmatprep.subr.mxu0 0.0
    %283 = vmatpush1.msra.mxu0 0.0
    %284 = vmatprep.subr.mxu0 0.0
    %285 = vmatpush1.msra.mxu0 0.0
    %286 = vmatprep.subr.mxu0 0.0
    %287 = vmatpush1.msra.mxu0 0.0
    %288 = vmatprep.subr.mxu0 0.0
    %289 = vmatpush1.msra.mxu0 %v261
    %290 = vmatprep.subr.mxu0 0.0
    %291 = vmatpush1.msra.mxu0 %v260
    %292 = vmatprep.subr.mxu0 0.0
    %293 = vmatpush1.msra.mxu0 %v259
    %294 = vmatprep.subr.mxu0 0.0
    %295 = vmatpush1.msra.mxu0 %v258
    %296 = vmatprep.subr.mxu0 0.0
    %297 = vmatpush1.msra.mxu0 %v257
    %298 = vmatprep.subr.mxu0 0.0
    %299 = vmatpush1.msra.mxu0 %v256
    %300 = vmatprep.subr.mxu0 0.0
    %301 = vmatpush1.msra.mxu0 %v255
    %302 = vmatprep.subr.mxu0 0.0
    %303 = vmatpush1.msra.mxu0 %v254
    %304 = vmatprep.subr.mxu0 0.0
    %305 = vmatpush2.msra.mxu0 0.0
    %306 = vmatprep.subr.mxu0 0.0
    %307 = vmatpush2.msra.mxu0 0.0
    %308 = vmatprep.subr.mxu0 0.0
    %309 = vmatpush2.msra.mxu0 0.0
    %310 = vmatprep.subr.mxu0 0.0
    %311 = vmatpush2.msra.mxu0 0.0
    %312 = vmatprep.subr.mxu0 0.0
    %313 = vmatpush2.msra.mxu0 0.0
    %314 = vmatprep.subr.mxu0 0.0
    %315 = vmatpush2.msra.mxu0 0.0
    %316 = vmatprep.subr.mxu0 0.0
    %317 = vmatpush2.msra.mxu0 0.0
    %318 = vmatprep.subr.mxu0 0.0
    %319 = vmatpush2.msra.mxu0 0.0
    %320 = vmatprep.subr.mxu0 0.0
    %321 = vmatpush2.msra.mxu0 0.0
    %322 = vmatprep.subr.mxu0 0.0
    %323 = vmatpush2.msra.mxu0 0.0
    %324 = vmatprep.subr.mxu0 0.0
    %325 = vmatpush2.msra.mxu0 0.0
    %326 = vmatprep.subr.mxu0 0.0
    %327 = vmatpush2.msra.mxu0 0.0
    %328 = vmatprep.subr.mxu0 0.0
    %329 = vmatpush2.msra.mxu0 0.0
    %330 = vmatprep.subr.mxu0 0.0
    %331 = vmatpush2.msra.mxu0 0.0
    %332 = vmatprep.subr.mxu0 0.0
    %333 = vmatpush2.msra.mxu0 0.0
    %334 = vmatprep.subr.mxu0 0.0
    %335 = vmatpush2.msra.mxu0 0.0
    %336 = vmatprep.mubr.f32.mxu0 0.0
    %337 = vmatmul.mubr.f32.gmra.mxu0 %v270
    %v338 = vpop.f32.mrf.mxu0
    %v339 = vadd.f32 %v267, %v338
    %v340 = vpop.f32.mrf.mxu0
    %341 = vdwg.mxu0
    %v342 = vxor.u32 %v339, 2147483648
    %v343 = vmul.f32 %v342, 1.442695
    %v344 = vpow.pop %v343
    %v345 = vadd.f32 %v344, 1.0
    %v346 = vrcp.pop %v345
    %v347 = vmul.f32 1.0, %v346
    %348 = vst [vmem:[%s7] sm:$0xff] %v347
    // Predicated region
    $region46: #{_fused.1} parent=1 // pred_check
      _
    $region47: #{_fused.1} parent=1 // pred_check_branch
      %350 = sbr.rel (0) target = $region49
    $region48: #{_fused.1} parent=1 // pred_region
      _
    $region49: #{_fused.1} parent=1 // pred_fallthru
      _
    // Predicated region
    $region50: #{_fused.1} parent=1 // pred_check
      _
    $region51: #{_fused.1} parent=1 // pred_check_branch
      %352 = sbr.rel (0) target = $region53
    $region52: #{_fused.1} parent=1 // pred_region
      _
    $region53: #{_fused.1} parent=1 // pred_fallthru
      _
    %353 = vsyncpa [#allocation3], 1
    %354 = vsyncpa [#allocation5], 1
    %355 = vsyncpa [#allocation8], 1

</llo_original>
